<compile_context>
chip_gen: v5e
topology: v5e:2x2
jax: 0.10.0
libtpu: 0.0.40
codegen_flags: <defaults>
</compile_context>

<pallas_src>
import jax
import jax.numpy as jnp
from jax.experimental import pallas as pl
from jax.experimental.pallas import tpu as pltpu

ROWS = 8  # the 3 GRU rows padded up to one full sublane group


def _rel_predict_kernel(h_ref, x_ref,
                        w_in_ref, b_in_ref,
                        w_ih_ref, b_ih_ref,
                        w_hh_ref, b_hh_ref,
                        w_out_ref, b_out_ref,
                        h_out_ref, pred_ref):
    """Fused forward: input projections, GRU cell, output Linear (4 MXU passes total)."""
    d = h_out_ref.shape[1]          # out_dim
    npad = pred_ref.shape[1]        # n_relation padded to a multiple of 128

    x = x_ref[...]                  # (ROWS, in_dim)  bf16, rows 3.. are zero
    h = h_ref[...]                  # (ROWS, out_dim) f32,  rows 3.. are zero

    # ---- input projections: one MXU pass against [w_rel | w_dlg] ----------------------------
    proj = jnp.dot(x, w_in_ref[...], preferred_element_type=jnp.float32) + b_in_ref[...]
    rel_part = proj[:, :d]          # rows 0,1 use relation_linear
    dlg_part = proj[:, d:]          # row 2 uses dialogue_linear
    row = jax.lax.broadcasted_iota(jnp.int32, (ROWS, d), 0)
    gx = jnp.where(row < 2, rel_part, dlg_part)                          # (ROWS, d) f32

    # ---- GRU cell: two fused gate matmuls ----------------------------------------------------
    #   gi = gx @ [Wir|Wiz|Win] + [bir|biz|bin] ;  gh = h @ [Whr|Whz|Whn] + [bhr|bhz|bhn]
    gi = jnp.dot(gx.astype(jnp.bfloat16), w_ih_ref[...],
                 preferred_element_type=jnp.float32) + b_ih_ref[...]     # (ROWS, 3d)
    gh = jnp.dot(h.astype(jnp.bfloat16), w_hh_ref[...],
                 preferred_element_type=jnp.float32) + b_hh_ref[...]     # (ROWS, 3d)

    r = jax.nn.sigmoid(gi[:, 0 * d:1 * d] + gh[:, 0 * d:1 * d])
    z = jax.nn.sigmoid(gi[:, 1 * d:2 * d] + gh[:, 1 * d:2 * d])
    n = jnp.tanh(gi[:, 2 * d:3 * d] + r * gh[:, 2 * d:3 * d])
    h_new = (1.0 - z) * n + z * h                                        # (ROWS, d) f32
    h_out_ref[...] = h_new

    # ---- final Linear(3*d -> n_relation): one MXU pass against [W0 | W1 | W2] ----------------
    # pred = b + h_new[0] @ W0 + h_new[1] @ W1 + h_new[2] @ W2  (== flattened (1,3d) matmul)
    prod = jnp.dot(h_new.astype(jnp.bfloat16), w_out_ref[...],
                   preferred_element_type=jnp.float32)                   # (ROWS, 3*npad)
    pred_ref[...] = (b_out_ref[...]
                     + prod[0:1, 0 * npad:1 * npad]
                     + prod[1:2, 1 * npad:2 * npad]
                     + prod[2:3, 2 * npad:3 * npad])


def rel_predict_forward(last_output, current_input, packed, n_relation):
    """Wrapper: pads rows/lanes, single pallas_call (no grid -> whole arrays, single-buffered)."""
    out_dim = last_output.shape[1]
    in_dim = current_input.shape[1]
    n_rel_pad = packed["b_out"].shape[1]

    # Pad the 3-row inputs to a full sublane group; padded rows are zero and never read back.
    h_pad = jnp.zeros((ROWS, out_dim), jnp.float32).at[:3, :].set(last_output.astype(jnp.float32))
    x_pad = jnp.zeros((ROWS, in_dim), jnp.bfloat16).at[:3, :].set(current_input.astype(jnp.bfloat16))

    h_out, pred = pl.pallas_call(
        _rel_predict_kernel,
        out_shape=(
            jax.ShapeDtypeStruct((ROWS, out_dim), jnp.float32),
            jax.ShapeDtypeStruct((1, n_rel_pad), jnp.float32),
        ),
        compiler_params=pltpu.CompilerParams(
            # Real-model weights (in_dim = out_dim = 768, bf16, single-buffered) need more than
            # v5e's 16 MiB default scoped VMEM; 48 MiB also stays under v7x's 64 MiB physical.
            vmem_limit_bytes=48 * 1024 * 1024,
        ),
    )(h_pad, x_pad,
      packed["w_in"], packed["b_in"],
      packed["w_ih"], packed["b_ih"],
      packed["w_hh"], packed["b_hh"],
      packed["w_out"], packed["b_out"])

    return h_out[:3], pred[0, :n_relation]      # un-pad; squeeze(0) matches torch


def init_params(key, in_dim, out_dim, n_relation):
    """Deterministic PyTorch-style uniform init (per-layer, f32, weights transposed for x @ W)."""
    ks = jax.random.split(key, 10)

    def uni(k, shape, fan_in):
        bound = 1.0 / jnp.sqrt(jnp.float32(fan_in))
        return jax.random.uniform(k, shape, jnp.float32, -bound, bound)

    return {
        # relation_linear / dialogue_linear : Linear(in_dim, out_dim)
        "w_rel": uni(ks[0], (in_dim, out_dim), in_dim),
        "b_rel": uni(ks[1], (1, out_dim), in_dim),
        "w_dlg": uni(ks[2], (in_dim, out_dim), in_dim),
        "b_dlg": uni(ks[3], (1, out_dim), in_dim),
        # GRUCell(out_dim, out_dim): gates stacked on leading axis in (r, z, n) order
        "w_ih": uni(ks[4], (3, out_dim, out_dim), out_dim),
        "b_ih": uni(ks[5], (3, 1, out_dim), out_dim),
        "w_hh": uni(ks[6], (3, out_dim, out_dim), out_dim),
        "b_hh": uni(ks[7], (3, 1, out_dim), out_dim),
        # final Linear(3*out_dim, n_relation), split per hidden row
        "w_out": uni(ks[8], (3, out_dim, n_relation), 3 * out_dim),
        "b_out": uni(ks[9], (1, n_relation), 3 * out_dim),
    }


def pack_params(p):
    """One-time prepack: lane-concatenate the fused weight matrices, cast weights to bf16,
    keep biases f32, pad n_relation up to a multiple of 128 for a lane-dense output store."""
    n_relation = p["b_out"].shape[1]
    n_rel_pad = ((n_relation + 127) // 128) * 128
    pad = n_rel_pad - n_relation
    w_out_blocks = [jnp.pad(p["w_out"][k], ((0, 0), (0, pad))) for k in range(3)]
    return {
        "w_in":  jnp.concatenate([p["w_rel"], p["w_dlg"]], axis=1).astype(jnp.bfloat16),
        "b_in":  jnp.concatenate([p["b_rel"], p["b_dlg"]], axis=1),
        "w_ih":  jnp.concatenate([p["w_ih"][k] for k in range(3)], axis=1).astype(jnp.bfloat16),
        "b_ih":  jnp.concatenate([p["b_ih"][k] for k in range(3)], axis=1),
        "w_hh":  jnp.concatenate([p["w_hh"][k] for k in range(3)], axis=1).astype(jnp.bfloat16),
        "b_hh":  jnp.concatenate([p["b_hh"][k] for k in range(3)], axis=1),
        "w_out": jnp.concatenate(w_out_blocks, axis=1).astype(jnp.bfloat16),
        "b_out": jnp.pad(p["b_out"], ((0, 0), (0, pad))).astype(jnp.float32),
    }


def rel_predict_reference(last_output, current_input, p, matmul_dtype=jnp.bfloat16):
    """Pure-JAX reference of the PyTorch forward. matmul_dtype=bf16 mirrors the kernel's
    bf16-operand / f32-accumulate matmuls; matmul_dtype=f32 is the exact PyTorch math."""
    def mdot(a, w):
        return jnp.dot(a.astype(matmul_dtype), w.astype(matmul_dtype),
                       preferred_element_type=jnp.float32)

    o1 = mdot(current_input[0:1], p["w_rel"]) + p["b_rel"]
    o2 = mdot(current_input[1:2], p["w_rel"]) + p["b_rel"]
    o3 = mdot(current_input[2:3], p["w_dlg"]) + p["b_dlg"]
    gx = jnp.concatenate([o1, o2, o3], axis=0)
    h = last_output
    r = jax.nn.sigmoid(mdot(gx, p["w_ih"][0]) + p["b_ih"][0] + mdot(h, p["w_hh"][0]) + p["b_hh"][0])
    z = jax.nn.sigmoid(mdot(gx, p["w_ih"][1]) + p["b_ih"][1] + mdot(h, p["w_hh"][1]) + p["b_hh"][1])
    n = jnp.tanh(mdot(gx, p["w_ih"][2]) + p["b_ih"][2] + r * (mdot(h, p["w_hh"][2]) + p["b_hh"][2]))
    h_new = (1.0 - z) * n + z * h
    pred = p["b_out"][0]
    for k in range(3):
        pred = pred + mdot(h_new[k:k + 1], p["w_out"][k])[0]
    return h_new, pred


if __name__ == "__main__":
    in_dim, out_dim, n_relation = 32, 32, 16   # small demo shapes (real model: in_dim=768)

    key = jax.random.PRNGKey(0)
    k_par, k_h, k_x = jax.random.split(key, 3)
    params = init_params(k_par, in_dim, out_dim, n_relation)
    packed = pack_params(params)
    last_output = jax.random.normal(k_h, (3, out_dim), jnp.float32)
    current_input = jax.random.normal(k_x, (3, in_dim), jnp.float32)

    current_output, predict = rel_predict_forward(last_output, current_input, packed, n_relation)
    jax.block_until_ready((current_output, predict))

    assert current_output.shape == (3, out_dim) and predict.shape == (n_relation,)

    # Tight check against a reference that uses the same bf16-operand / f32-accumulate matmuls.
    ref_h, ref_pred = rel_predict_reference(last_output, current_input, params, jnp.bfloat16)
    assert jnp.allclose(current_output, ref_h, atol=2e-3, rtol=2e-3)
    assert jnp.allclose(predict, ref_pred, atol=2e-3, rtol=2e-3)

    # Loose semantic check against the exact f32 PyTorch math (bf16 matmul precision).
    f32_h, f32_pred = rel_predict_reference(last_output, current_input, params, jnp.float32)
    assert jnp.allclose(current_output, f32_h, atol=1e-1, rtol=1e-1)
    assert jnp.allclose(predict, f32_pred, atol=1e-1, rtol=1e-1)

    print("KERNEL_OK")
</pallas_src>

<mosaic_0001>
module attributes {stable_mosaic.version = 11 : i64} {
  func.func @_rel_predict_kernel(%arg0: memref<8x32xf32, #tpu.memory_space<vmem>>, %arg1: memref<8x32xbf16, #tpu.memory_space<vmem>>, %arg2: memref<32x64xbf16, #tpu.memory_space<vmem>>, %arg3: memref<1x64xf32, #tpu.memory_space<vmem>>, %arg4: memref<32x96xbf16, #tpu.memory_space<vmem>>, %arg5: memref<1x96xf32, #tpu.memory_space<vmem>>, %arg6: memref<32x96xbf16, #tpu.memory_space<vmem>>, %arg7: memref<1x96xf32, #tpu.memory_space<vmem>>, %arg8: memref<32x384xbf16, #tpu.memory_space<vmem>>, %arg9: memref<1x128xf32, #tpu.memory_space<vmem>>, %arg10: memref<8x32xf32, #tpu.memory_space<vmem>>, %arg11: memref<1x128xf32, #tpu.memory_space<vmem>>) attributes {dimension_semantics = [], scalar_prefetch = 0 : i64, scratch_operands = 0 : i64, tpu.core_type = #tpu.core_type<tc>} {
    %c0 = arith.constant 0 : index
    %c0_0 = arith.constant 0 : index
    %0 = vector.load %arg1[%c0, %c0_0] : memref<8x32xbf16, #tpu.memory_space<vmem>>, vector<8x32xbf16>
    %c0_1 = arith.constant 0 : index
    %c0_2 = arith.constant 0 : index
    %1 = vector.load %arg0[%c0_1, %c0_2] : memref<8x32xf32, #tpu.memory_space<vmem>>, vector<8x32xf32>
    %c0_3 = arith.constant 0 : index
    %c0_4 = arith.constant 0 : index
    %2 = vector.load %arg2[%c0_3, %c0_4] : memref<32x64xbf16, #tpu.memory_space<vmem>>, vector<32x64xbf16>
    %cst = arith.constant dense<0.000000e+00> : vector<8x64xf32>
    %3 = tpu.matmul %0, %2, %cst {dimension_numbers = #tpu.dot_dimension_numbers<[1], [0], [0], [1], [0, 0, 1, 1], [], []>} : vector<8x32xbf16>, vector<32x64xbf16>, vector<8x64xf32> -> vector<8x64xf32>
    %c0_5 = arith.constant 0 : index
    %c0_6 = arith.constant 0 : index
    %4 = vector.load %arg3[%c0_5, %c0_6] : memref<1x64xf32, #tpu.memory_space<vmem>>, vector<1x64xf32>
    %5 = vector.broadcast %4 : vector<1x64xf32> to vector<8x64xf32>
    %6 = arith.addf %3, %5 : vector<8x64xf32>
    %7 = vector.extract_strided_slice %6 {offsets = [0, 0], sizes = [8, 32], strides = [1, 1]} : vector<8x64xf32> to vector<8x32xf32>
    %8 = vector.extract_strided_slice %6 {offsets = [0, 32], sizes = [8, 32], strides = [1, 1]} : vector<8x64xf32> to vector<8x32xf32>
    %9 = tpu.iota {dimensions = array<i32: 0>} : vector<8x32xi32>
    %c2_i32 = arith.constant 2 : i32
    %10 = vector.broadcast %c2_i32 : i32 to vector<8x32xi32>
    %11 = arith.cmpi slt, %9, %10 : vector<8x32xi32>
    %12 = arith.select %11, %7, %8 : vector<8x32xi1>, vector<8x32xf32>
    %13 = arith.truncf %12 : vector<8x32xf32> to vector<8x32xbf16>
    %c0_7 = arith.constant 0 : index
    %c0_8 = arith.constant 0 : index
    %14 = vector.load %arg4[%c0_7, %c0_8] : memref<32x96xbf16, #tpu.memory_space<vmem>>, vector<32x96xbf16>
    %cst_9 = arith.constant dense<0.000000e+00> : vector<8x96xf32>
    %15 = tpu.matmul %13, %14, %cst_9 {dimension_numbers = #tpu.dot_dimension_numbers<[1], [0], [0], [1], [0, 0, 1, 1], [], []>} : vector<8x32xbf16>, vector<32x96xbf16>, vector<8x96xf32> -> vector<8x96xf32>
    %c0_10 = arith.constant 0 : index
    %c0_11 = arith.constant 0 : index
    %16 = vector.load %arg5[%c0_10, %c0_11] : memref<1x96xf32, #tpu.memory_space<vmem>>, vector<1x96xf32>
    %17 = vector.broadcast %16 : vector<1x96xf32> to vector<8x96xf32>
    %18 = arith.addf %15, %17 : vector<8x96xf32>
    %19 = arith.truncf %1 : vector<8x32xf32> to vector<8x32xbf16>
    %c0_12 = arith.constant 0 : index
    %c0_13 = arith.constant 0 : index
    %20 = vector.load %arg6[%c0_12, %c0_13] : memref<32x96xbf16, #tpu.memory_space<vmem>>, vector<32x96xbf16>
    %cst_14 = arith.constant dense<0.000000e+00> : vector<8x96xf32>
    %21 = tpu.matmul %19, %20, %cst_14 {dimension_numbers = #tpu.dot_dimension_numbers<[1], [0], [0], [1], [0, 0, 1, 1], [], []>} : vector<8x32xbf16>, vector<32x96xbf16>, vector<8x96xf32> -> vector<8x96xf32>
    %c0_15 = arith.constant 0 : index
    %c0_16 = arith.constant 0 : index
    %22 = vector.load %arg7[%c0_15, %c0_16] : memref<1x96xf32, #tpu.memory_space<vmem>>, vector<1x96xf32>
    %23 = vector.broadcast %22 : vector<1x96xf32> to vector<8x96xf32>
    %24 = arith.addf %21, %23 : vector<8x96xf32>
    %25 = vector.extract_strided_slice %18 {offsets = [0, 0], sizes = [8, 32], strides = [1, 1]} : vector<8x96xf32> to vector<8x32xf32>
    %26 = vector.extract_strided_slice %24 {offsets = [0, 0], sizes = [8, 32], strides = [1, 1]} : vector<8x96xf32> to vector<8x32xf32>
    %27 = arith.addf %25, %26 : vector<8x32xf32>
    %28 = arith.negf %27 : vector<8x32xf32>
    %29 = math.exp %28 : vector<8x32xf32>
    %cst_17 = arith.constant 1.000000e+00 : f32
    %30 = vector.broadcast %cst_17 : f32 to vector<8x32xf32>
    %31 = arith.addf %30, %29 : vector<8x32xf32>
    %32 = arith.divf %30, %31 : vector<8x32xf32>
    %33 = vector.extract_strided_slice %18 {offsets = [0, 32], sizes = [8, 32], strides = [1, 1]} : vector<8x96xf32> to vector<8x32xf32>
    %34 = vector.extract_strided_slice %24 {offsets = [0, 32], sizes = [8, 32], strides = [1, 1]} : vector<8x96xf32> to vector<8x32xf32>
    %35 = arith.addf %33, %34 : vector<8x32xf32>
    %36 = arith.negf %35 : vector<8x32xf32>
    %37 = math.exp %36 : vector<8x32xf32>
    %cst_18 = arith.constant 1.000000e+00 : f32
    %38 = vector.broadcast %cst_18 : f32 to vector<8x32xf32>
    %39 = arith.addf %38, %37 : vector<8x32xf32>
    %40 = arith.divf %38, %39 : vector<8x32xf32>
    %41 = vector.extract_strided_slice %18 {offsets = [0, 64], sizes = [8, 32], strides = [1, 1]} : vector<8x96xf32> to vector<8x32xf32>
    %42 = vector.extract_strided_slice %24 {offsets = [0, 64], sizes = [8, 32], strides = [1, 1]} : vector<8x96xf32> to vector<8x32xf32>
    %43 = arith.mulf %32, %42 : vector<8x32xf32>
    %44 = arith.addf %41, %43 : vector<8x32xf32>
    %45 = math.tanh %44 : vector<8x32xf32>
    %cst_19 = arith.constant 1.000000e+00 : f32
    %46 = vector.broadcast %cst_19 : f32 to vector<8x32xf32>
    %47 = arith.subf %46, %40 : vector<8x32xf32>
    %48 = arith.mulf %47, %45 : vector<8x32xf32>
    %49 = arith.mulf %40, %1 : vector<8x32xf32>
    %50 = arith.addf %48, %49 : vector<8x32xf32>
    %c0_20 = arith.constant 0 : index
    %c0_21 = arith.constant 0 : index
    %51 = vector.load %arg10[%c0_20, %c0_21] : memref<8x32xf32, #tpu.memory_space<vmem>>, vector<8x32xf32>
    tpu.vector_store %arg10[%c0_20, %c0_21], %50 {strides = array<i32>} : memref<8x32xf32, #tpu.memory_space<vmem>>, vector<8x32xf32>,
    %52 = arith.truncf %50 : vector<8x32xf32> to vector<8x32xbf16>
    %c0_22 = arith.constant 0 : index
    %c0_23 = arith.constant 0 : index
    %53 = vector.load %arg8[%c0_22, %c0_23] : memref<32x384xbf16, #tpu.memory_space<vmem>>, vector<32x384xbf16>
    %cst_24 = arith.constant dense<0.000000e+00> : vector<8x384xf32>
    %54 = tpu.matmul %52, %53, %cst_24 {dimension_numbers = #tpu.dot_dimension_numbers<[1], [0], [0], [1], [0, 0, 1, 1], [], []>} : vector<8x32xbf16>, vector<32x384xbf16>, vector<8x384xf32> -> vector<8x384xf32>
    %c0_25 = arith.constant 0 : index
    %c0_26 = arith.constant 0 : index
    %55 = vector.load %arg9[%c0_25, %c0_26] : memref<1x128xf32, #tpu.memory_space<vmem>>, vector<1x128xf32>
    %56 = vector.extract_strided_slice %54 {offsets = [0, 0], sizes = [1, 128], strides = [1, 1]} : vector<8x384xf32> to vector<1x128xf32>
    %57 = arith.addf %55, %56 : vector<1x128xf32>
    %58 = vector.extract_strided_slice %54 {offsets = [1, 128], sizes = [1, 128], strides = [1, 1]} : vector<8x384xf32> to vector<1x128xf32>
    %59 = arith.addf %57, %58 : vector<1x128xf32>
    %60 = vector.extract_strided_slice %54 {offsets = [2, 256], sizes = [1, 128], strides = [1, 1]} : vector<8x384xf32> to vector<1x128xf32>
    %61 = arith.addf %59, %60 : vector<1x128xf32>
    %c0_27 = arith.constant 0 : index
    %c0_28 = arith.constant 0 : index
    %62 = vector.load %arg11[%c0_27, %c0_28] : memref<1x128xf32, #tpu.memory_space<vmem>>, vector<1x128xf32>
    tpu.vector_store %arg11[%c0_27, %c0_28], %61 {strides = array<i32>} : memref<1x128xf32, #tpu.memory_space<vmem>>, vector<1x128xf32>,
    return
  }
}

</mosaic_0001>

<llo_original>
// kernel: tpu_custom_call.1
$region0: #{tpu_custom_call.1}
  #allocation0 [shape = 'u32[]', space=smem, size = 0x4, offset = 0x4, fixed_abs, tag = 'smem constant byte address 0x4 - core index']
  #allocation1 [shape = 'u32[72,128]{1,0:T(1,128)}', space=vmem, size = 0x9000, scoped, tag = 'internal scratch']
  %s0 = inlined_call_operand.hbm [shape: f32[8,32], index: 0, kind: input, shape index: {}]
  %s1 = inlined_call_operand.hbm [shape: bf16[8,32], index: 1, kind: input, shape index: {}]
  %s2 = inlined_call_operand.hbm [shape: bf16[32,64], index: 2, kind: input, shape index: {}]
  %s3 = inlined_call_operand.vmem [shape: f32[1,64], index: 3, kind: input, shape index: {}]
  %s4 = inlined_call_operand.hbm [shape: bf16[32,96], index: 4, kind: input, shape index: {}]
  %s5 = inlined_call_operand.vmem [shape: f32[1,96], index: 5, kind: input, shape index: {}]
  %s6 = inlined_call_operand.hbm [shape: bf16[32,96], index: 6, kind: input, shape index: {}]
  %s7 = inlined_call_operand.vmem [shape: f32[1,96], index: 7, kind: input, shape index: {}]
  %s8 = inlined_call_operand.hbm [shape: bf16[32,384], index: 8, kind: input, shape index: {}]
  %s9 = inlined_call_operand.vmem [shape: f32[1,128], index: 9, kind: input, shape index: {}]
  %s10 = inlined_call_operand.hbm [shape: f32[8,32], index: 10, kind: output, shape index: {0}]
  %s11 = inlined_call_operand.hbm [shape: f32[1,128], index: 11, kind: output, shape index: {1}]
  %12 = xla_tuple %s10, %s11
  %s13 = sld [smem:[#allocation0]]
  $region82: #{tpu_custom_call.1} parent=0
    _
  %s15 = ssub.s32 1, %s13
  %s16 = scalar_select 0, %s15, %s13
  $region1: #{tpu_custom_call.1} parent=0
    #allocation2 [shape = 'u8[4096]{0}', space=vmem, size = 0x1000, scoped, tag = 'input window, operand 0, single buffered']
    #allocation3 [shape = 's32[1]{0}', space=sflag, size = 0x4, scoped, tag = 'scoped memory for tpu_custom_call.1']
    #allocation4 [shape = 's32[1]{0}', space=sflag, size = 0x4, scoped, tag = 'scoped memory for tpu_custom_call.1']
    #allocation5 [shape = 'u8[2048]{0}', space=vmem, size = 0x800, scoped, tag = 'input window, operand 1, single buffered']
    #allocation6 [shape = 's32[1]{0}', space=sflag, size = 0x4, scoped, tag = 'scoped memory for tpu_custom_call.1']
    #allocation7 [shape = 'u8[8192]{0}', space=vmem, size = 0x2000, scoped, tag = 'input window, operand 2, single buffered']
    #allocation8 [shape = 'u8[8192]{0}', space=vmem, size = 0x2000, scoped, tag = 'input window, operand 4, single buffered']
    #allocation9 [shape = 's32[1]{0}', space=sflag, size = 0x4, scoped, tag = 'scoped memory for tpu_custom_call.1']
    #allocation10 [shape = 'u8[8192]{0}', space=vmem, size = 0x2000, scoped, tag = 'input window, operand 6, single buffered']
    #allocation11 [shape = 'u8[24576]{0}', space=vmem, size = 0x6000, scoped, tag = 'input window, operand 8, single buffered']
    #allocation12 [shape = 's32[1]{0}', space=sflag, size = 0x4, scoped, tag = 'scoped memory for tpu_custom_call.1']
    #allocation13 [shape = 'u8[4096]{0}', space=vmem, size = 0x1000, scoped, tag = 'output window, operand 0, single buffered']
    #allocation14 [shape = 'u8[512]{0}', space=vmem, size = 0x400, scoped, tag = 'output window, operand 1, single buffered']
    #allocation15 [shape = 's32[1]{0}', space=sflag, size = 0x4, scoped, tag = 'scoped memory for tpu_custom_call.1']
    %17 = vsyncpa [#allocation3], 0
    %18 = vsyncpa [#allocation6], 0
    %19 = vsyncpa [#allocation9], 0
    %20 = vsyncpa [#allocation12], 0
    %21 = vsyncpa [#allocation4], 0
    %22 = vsyncpa [#allocation15], 0
    // Predicated region
    $region2: #{tpu_custom_call.1} parent=1 // pred_check
      _
    $region3: #{tpu_custom_call.1} parent=1 // pred_check_branch
      %24 = sbr.rel (0) target = $region5
    $region4: #{tpu_custom_call.1} parent=1 // pred_region
      %26 = vsyncadd [#allocation3], 0
      %s28 = sshll.u32 %s0, 4
      %s29 = int_to_ptr.hbm [resolvable:$true] %s28
      %s30 = sshll.u32 [#allocation2], 4
      %s31 = int_to_ptr.vmem [resolvable:$true] %s30
      %33 = dma.hbm_to_vmem [thread:$0]  %s29, 128, %s31, [#allocation3]
    $region5: #{tpu_custom_call.1} parent=1 // pred_fallthru
      _
    // Predicated region
    $region6: #{tpu_custom_call.1} parent=1 // pred_check
      _
    $region7: #{tpu_custom_call.1} parent=1 // pred_check_branch
      %35 = sbr.rel (0) target = $region9
    $region8: #{tpu_custom_call.1} parent=1 // pred_region
      %37 = vsyncadd [#allocation6], 0
      %s39 = sshll.u32 %s1, 4
      %s40 = int_to_ptr.hbm [resolvable:$true] %s39
      %s41 = sshll.u32 [#allocation5], 4
      %s42 = int_to_ptr.vmem [resolvable:$true] %s41
      %44 = dma.hbm_to_vmem [thread:$0]  %s40, 64, %s42, [#allocation6]
    $region9: #{tpu_custom_call.1} parent=1 // pred_fallthru
      _
    // Predicated region
    $region10: #{tpu_custom_call.1} parent=1 // pred_check
      _
    $region11: #{tpu_custom_call.1} parent=1 // pred_check_branch
      %46 = sbr.rel (0) target = $region13
    $region12: #{tpu_custom_call.1} parent=1 // pred_region
      %48 = vsyncadd [#allocation6], 0
      %s49 = sshll.u32 %s2, 4
      %s50 = int_to_ptr.hbm [resolvable:$true] %s49
      %s51 = sshll.u32 [#allocation7], 4
      %s52 = int_to_ptr.vmem [resolvable:$true] %s51
      %57 = dma.hbm_to_vmem [thread:$0]  %s50, 256, %s52, [#allocation6], 64, 64, 4
    $region13: #{tpu_custom_call.1} parent=1 // pred_fallthru
      _
    // Predicated region
    $region14: #{tpu_custom_call.1} parent=1 // pred_check
      _
    $region15: #{tpu_custom_call.1} parent=1 // pred_check_branch
      %59 = sbr.rel (0) target = $region17
    $region16: #{tpu_custom_call.1} parent=1 // pred_region
      _
    $region17: #{tpu_custom_call.1} parent=1 // pred_fallthru
      _
    // Predicated region
    $region18: #{tpu_custom_call.1} parent=1 // pred_check
      _
    $region19: #{tpu_custom_call.1} parent=1 // pred_check_branch
      %61 = sbr.rel (0) target = $region21
    $region20: #{tpu_custom_call.1} parent=1 // pred_region
      %63 = vsyncadd [#allocation9], 0
      %s64 = sshll.u32 %s4, 4
      %s65 = int_to_ptr.hbm [resolvable:$true] %s64
      %s66 = sshll.u32 [#allocation8], 4
      %s67 = int_to_ptr.vmem [resolvable:$true] %s66
      %72 = dma.hbm_to_vmem [thread:$0]  %s65, 256, %s67, [#allocation9], 64, 64, 4
    $region21: #{tpu_custom_call.1} parent=1 // pred_fallthru
      _
    // Predicated region
    $region22: #{tpu_custom_call.1} parent=1 // pred_check
      _
    $region23: #{tpu_custom_call.1} parent=1 // pred_check_branch
      %74 = sbr.rel (0) target = $region25
    $region24: #{tpu_custom_call.1} parent=1 // pred_region
      _
    $region25: #{tpu_custom_call.1} parent=1 // pred_fallthru
      _
    // Predicated region
    $region26: #{tpu_custom_call.1} parent=1 // pred_check
      _
    $region27: #{tpu_custom_call.1} parent=1 // pred_check_branch
      %76 = sbr.rel (0) target = $region29
    $region28: #{tpu_custom_call.1} parent=1 // pred_region
      %78 = vsyncadd [#allocation9], 0
      %s79 = sshll.u32 %s6, 4
      %s80 = int_to_ptr.hbm [resolvable:$true] %s79
      %s81 = sshll.u32 [#allocation10], 4
      %s82 = int_to_ptr.vmem [resolvable:$true] %s81
      %87 = dma.hbm_to_vmem [thread:$0]  %s80, 256, %s82, [#allocation9], 64, 64, 4
    $region29: #{tpu_custom_call.1} parent=1 // pred_fallthru
      _
    // Predicated region
    $region30: #{tpu_custom_call.1} parent=1 // pred_check
      _
    $region31: #{tpu_custom_call.1} parent=1 // pred_check_branch
      %89 = sbr.rel (0) target = $region33
    $region32: #{tpu_custom_call.1} parent=1 // pred_region
      _
    $region33: #{tpu_custom_call.1} parent=1 // pred_fallthru
      _
    // Predicated region
    $region34: #{tpu_custom_call.1} parent=1 // pred_check
      _
    $region35: #{tpu_custom_call.1} parent=1 // pred_check_branch
      %91 = sbr.rel (0) target = $region37
    $region36: #{tpu_custom_call.1} parent=1 // pred_region
      %93 = vsyncadd [#allocation12], 0
      %s94 = sshll.u32 %s8, 4
      %s95 = int_to_ptr.hbm [resolvable:$true] %s94
      %s96 = sshll.u32 [#allocation11], 4
      %s97 = int_to_ptr.vmem [resolvable:$true] %s96
      %102 = dma.hbm_to_vmem [thread:$0]  %s95, 768, %s97, [#allocation12], 192, 192, 12
    $region37: #{tpu_custom_call.1} parent=1 // pred_fallthru
      _
    // Predicated region
    $region38: #{tpu_custom_call.1} parent=1 // pred_check
      _
    $region39: #{tpu_custom_call.1} parent=1 // pred_check_branch
      %104 = sbr.rel (0) target = $region41
    $region40: #{tpu_custom_call.1} parent=1 // pred_region
      _
    $region41: #{tpu_custom_call.1} parent=1 // pred_fallthru
      _
    // Predicated region
    $region42: #{tpu_custom_call.1} parent=1 // pred_check
      _
    $region43: #{tpu_custom_call.1} parent=1 // pred_check_branch
      %106 = sbr.rel (0) target = $region45
    $region44: #{tpu_custom_call.1} parent=1 // pred_region
      %108 = dma.done [#allocation3], 128
    $region45: #{tpu_custom_call.1} parent=1 // pred_fallthru
      _
    // Predicated region
    $region46: #{tpu_custom_call.1} parent=1 // pred_check
      _
    $region47: #{tpu_custom_call.1} parent=1 // pred_check_branch
      %110 = sbr.rel (0) target = $region49
    $region48: #{tpu_custom_call.1} parent=1 // pred_region
      %112 = dma.done [#allocation6], 64
    $region49: #{tpu_custom_call.1} parent=1 // pred_fallthru
      _
    // Predicated region
    $region50: #{tpu_custom_call.1} parent=1 // pred_check
      _
    $region51: #{tpu_custom_call.1} parent=1 // pred_check_branch
      %114 = sbr.rel (0) target = $region53
    $region52: #{tpu_custom_call.1} parent=1 // pred_region
      %116 = dma.done [#allocation6], 256
    $region53: #{tpu_custom_call.1} parent=1 // pred_fallthru
      _
    // Predicated region
    $region54: #{tpu_custom_call.1} parent=1 // pred_check
      _
    $region55: #{tpu_custom_call.1} parent=1 // pred_check_branch
      %118 = sbr.rel (0) target = $region57
    $region56: #{tpu_custom_call.1} parent=1 // pred_region
      %120 = dma.done [#allocation9], 256
    $region57: #{tpu_custom_call.1} parent=1 // pred_fallthru
      _
    // Predicated region
    $region58: #{tpu_custom_call.1} parent=1 // pred_check
      _
    $region59: #{tpu_custom_call.1} parent=1 // pred_check_branch
      %122 = sbr.rel (0) target = $region61
    $region60: #{tpu_custom_call.1} parent=1 // pred_region
      %124 = dma.done [#allocation9], 256
    $region61: #{tpu_custom_call.1} parent=1 // pred_fallthru
      _
    // Predicated region
    $region62: #{tpu_custom_call.1} parent=1 // pred_check
      _
    $region63: #{tpu_custom_call.1} parent=1 // pred_check_branch
      %126 = sbr.rel (0) target = $region65
    $region64: #{tpu_custom_call.1} parent=1 // pred_region
      %128 = dma.done [#allocation12], 768
    $region65: #{tpu_custom_call.1} parent=1 // pred_fallthru
      _
    %v130 = vld [vmem:[#allocation5] sm:$0xf]
    %v131 = vld [vmem:[#allocation2] sm:$0xff]
    %v132 = vld [vmem:[#allocation7] sm:$0xf]
    %v133 = vld [vmem:[#allocation7 + $0x4] sm:$0xf]
    %v134 = vld [vmem:[#allocation7 + $0x8] sm:$0xf]
    %v135 = vld [vmem:[#allocation7 + $0xc] sm:$0xf]
    %v136 = vld [vmem:[%s3] sm:$0x1]
    %v138 = vperm.slane %v136, 0
    %v144 = vunpack.c.l.b16 %v132
    %v145 = vunpack.c.l.b16 %v133
    %v146 = vunpack.c.l.b16 %v134
    %v147 = vunpack.c.l.b16 %v135
    %v148 = vpack.c.b16 %v145, %v144
    %v149 = vpack.c.b16 %v147, %v146
    %vm152 = vcmask 261120
    %v154 = vsel %vm152, %v130, 0
    %156 = vmatpush.bf16.msra.mxu0 0
    %157 = vmatpush.bf16.msra.mxu0 0
    %158 = vmatpush.bf16.msra.mxu0 0
    %159 = vmatpush.bf16.msra.mxu0 0
    %160 = vmatpush.bf16.msra.mxu0 0
    %161 = vmatpush.bf16.msra.mxu0 0
    %162 = vmatpush.bf16.msra.mxu0 %v149
    %163 = vmatpush.bf16.msra.mxu0 %v148
    %164 = vmatmul.bf16.gmra.mxu0 %v154
    %v165 = vpop.f32.mrf.mxu0
    %v166 = vadd.f32 %v138, %v165
    %v167 = vpop.f32.mrf.mxu0
    %168 = vdwg.mxu0
    %v169 = vlaneseq
    %v170 = vshrl.u32 %v169, 7
    %vm171 = vcmp.lt.s32.totalorder %v170, 2
    %173 = vrot.lane.b32.xlu0 %v166, 96
    %v174 = vpop.permute.xlu0 %173
    %v176 = vsel %vm171, %v166, %v174
    %v177 = vpack.c.bf16 %v176, %v176
    %v178 = vld [vmem:[#allocation8] sm:$0xf]
    %v179 = vld [vmem:[#allocation8 + $0x4] sm:$0xf]
    %v180 = vld [vmem:[#allocation8 + $0x8] sm:$0xf]
    %v181 = vld [vmem:[#allocation8 + $0xc] sm:$0xf]
    %v182 = vld [vmem:[%s5] sm:$0x1]
    %v184 = vperm.slane %v182, 0
    %v190 = vunpack.c.l.b16 %v178
    %v191 = vunpack.c.l.b16 %v179
    %v192 = vunpack.c.l.b16 %v180
    %v193 = vunpack.c.l.b16 %v181
    %v194 = vpack.c.b16 %v191, %v190
    %v195 = vpack.c.b16 %v193, %v192
    %v199 = vsel %vm152, %v177, 0
    %201 = vmatpush.bf16.msra.mxu0 0
    %202 = vmatpush.bf16.msra.mxu0 0
    %203 = vmatpush.bf16.msra.mxu0 0
    %204 = vmatpush.bf16.msra.mxu0 0
    %205 = vmatpush.bf16.msra.mxu0 0
    %206 = vmatpush.bf16.msra.mxu0 0
    %207 = vmatpush.bf16.msra.mxu0 %v195
    %208 = vmatpush.bf16.msra.mxu0 %v194
    %209 = vmatmul.bf16.gmra.mxu0 %v199
    %v210 = vpop.f32.mrf.mxu0
    %v211 = vadd.f32 %v184, %v210
    %v212 = vpop.f32.mrf.mxu0
    %213 = vdwg.mxu0
    %v214 = vpack.c.bf16 %v131, %v131
    %v215 = vld [vmem:[#allocation10] sm:$0xf]
    %v216 = vld [vmem:[#allocation10 + $0x4] sm:$0xf]
    %v217 = vld [vmem:[#allocation10 + $0x8] sm:$0xf]
    %v218 = vld [vmem:[#allocation10 + $0xc] sm:$0xf]
    %v219 = vld [vmem:[%s7] sm:$0x1]
    %v221 = vperm.slane %v219, 0
    %v227 = vunpack.c.l.b16 %v215
    %v228 = vunpack.c.l.b16 %v216
    %v229 = vunpack.c.l.b16 %v217
    %v230 = vunpack.c.l.b16 %v218
    %v231 = vpack.c.b16 %v228, %v227
    %v232 = vpack.c.b16 %v230, %v229
    %v236 = vsel %vm152, %v214, 0
    %238 = vmatpush.bf16.msra.mxu0 0
    %239 = vmatpush.bf16.msra.mxu0 0
    %240 = vmatpush.bf16.msra.mxu0 0
    %241 = vmatpush.bf16.msra.mxu0 0
    %242 = vmatpush.bf16.msra.mxu0 0
    %243 = vmatpush.bf16.msra.mxu0 0
    %244 = vmatpush.bf16.msra.mxu0 %v232
    %245 = vmatpush.bf16.msra.mxu0 %v231
    %246 = vmatmul.bf16.gmra.mxu0 %v236
    %v247 = vpop.f32.mrf.mxu0
    %v248 = vadd.f32 %v221, %v247
    %v249 = vpop.f32.mrf.mxu0
    %250 = vdwg.mxu0
    %v251 = vadd.f32 %v211, %v248
    %v252 = vxor.u32 %v251, 2147483648
    %v253 = vmul.f32 %v252, 1.442695
    %v254 = vpow.pop %v253
    %v255 = vadd.f32 %v254, 1.0
    %v256 = vrcp.pop %v255
    %v257 = vmul.f32 %v255, %v256
    %v258 = vsub.f32 1.0, %v257
    %v259 = vmul.f32 %v256, %v258
    %v260 = vadd.f32 %v256, %v259
    %vm261 = vweird.f32 %v255
    %vm262 = vweird.f32 %v256
    %vm263 = vmor %vm261, %vm262
    %v264 = vsel %vm263, %v256, %v260
    %v265 = vand.u32 2147483647, %v255
    %vm266 = vcmp.eq.f32.partialorder %v265, 8.507059e+37
    %v267 = vand.u32 %v255, 2147483648
    %v268 = vor.u32 1.1754944e-38, %v267
    %v269 = vsel %vm266, %v268, %v264
    %v270 = vmul.f32 1.0, %v269
    %272 = vrot.lane.b32.xlu0 %v248, 64
    %v273 = vpop.permute.xlu0 %272
    %v275 = vmul.f32 %v270, %v273
    %277 = vrot.lane.b32.xlu0 %v275, 64
    %v278 = vpop.permute.xlu0 %277
    %v280 = vadd.f32 %v211, %v278
    %v281 = vtanh.pop %v280
    %v282 = vsub.f32 1.0, %v270
    %284 = vrot.lane.b32.xlu0 %v281, 96
    %v285 = vpop.permute.xlu0 %284
    %v287 = vmul.f32 %v282, %v285
    %289 = vrot.lane.b32.xlu0 %v131, 32
    %v290 = vpop.permute.xlu0 %289
    %v292 = vmul.f32 %v270, %v290
    %v293 = vadd.f32 %v287, %v292
    %295 = vrot.lane.b32.xlu0 %v293, 96
    %v296 = vpop.permute.xlu0 %295
    %298 = vst.msk [vmem:[#allocation13] sm:$0xff] %vm152, %v296
    %v299 = vpack.c.bf16 %v293, %v293
    %v300 = vld [vmem:[#allocation11] sm:$0xff]
    %v301 = vld [vmem:[#allocation11 + $0x8] sm:$0xf]
    %v302 = vld [vmem:[#allocation11 + $0xc] sm:$0xff]
    %v303 = vld [vmem:[#allocation11 + $0x14] sm:$0xf]
    %v304 = vld [vmem:[#allocation11 + $0x18] sm:$0xff]
    %v305 = vld [vmem:[#allocation11 + $0x20] sm:$0xf]
    %v306 = vld [vmem:[#allocation11 + $0x24] sm:$0xff]
    %v307 = vld [vmem:[#allocation11 + $0x2c] sm:$0xf]
    %309 = vrot.lane.b32.xlu0 %v299, 96
    %v310 = vpop.permute.xlu0 %309
    %v319 = vunpack.c.l.b16 %v300
    %v320 = vunpack.c.h.b16 %v300
    %v321 = vunpack.c.l.b16 %v301
    %v322 = vunpack.c.l.b16 %v302
    %v323 = vunpack.c.h.b16 %v302
    %v324 = vunpack.c.l.b16 %v303
    %v325 = vunpack.c.l.b16 %v304
    %v326 = vunpack.c.h.b16 %v304
    %v327 = vunpack.c.l.b16 %v305
    %v328 = vunpack.c.l.b16 %v306
    %v329 = vunpack.c.h.b16 %v306
    %v330 = vunpack.c.l.b16 %v307
    %v331 = vpack.c.b16 %v322, %v319
    %v332 = vpack.c.b16 %v323, %v320
    %v333 = vpack.c.b16 %v324, %v321
    %v334 = vpack.c.b16 %v328, %v325
    %v335 = vpack.c.b16 %v329, %v326
    %v336 = vpack.c.b16 %v330, %v327
    %v344 = vsel %vm152, %v310, 0
    %346 = vmatpush.bf16.msra.mxu0 0
    %347 = vmatpush.bf16.msra.mxu0 0
    %348 = vmatpush.bf16.msra.mxu0 0
    %349 = vmatpush.bf16.msra.mxu0 0
    %350 = vmatpush.bf16.msra.mxu0 0
    %351 = vmatpush.bf16.msra.mxu0 0
    %352 = vmatpush.bf16.msra.mxu0 %v334
    %353 = vmatpush.bf16.msra.mxu0 %v331
    %354 = vmatmul.bf16.gmra.mxu0 %v344
    %v355 = vpop.f32.mrf.mxu0
    %v356 = vadd.f32 0.0, %v355
    %v357 = vpop.f32.mrf.mxu0
    %358 = vdwg.mxu0
    %359 = vmatpush.bf16.msra.mxu0 0
    %360 = vmatpush.bf16.msra.mxu0 0
    %361 = vmatpush.bf16.msra.mxu0 0
    %362 = vmatpush.bf16.msra.mxu0 0
    %363 = vmatpush.bf16.msra.mxu0 0
    %364 = vmatpush.bf16.msra.mxu0 0
    %365 = vmatpush.bf16.msra.mxu0 %v335
    %366 = vmatpush.bf16.msra.mxu0 %v332
    %367 = vmatmul.bf16.gmra.mxu0 %v344
    %v368 = vpop.f32.mrf.mxu0
    %v369 = vadd.f32 0.0, %v368
    %v370 = vpop.f32.mrf.mxu0
    %371 = vdwg.mxu0
    %372 = vmatpush.bf16.msra.mxu0 0
    %373 = vmatpush.bf16.msra.mxu0 0
    %374 = vmatpush.bf16.msra.mxu0 0
    %375 = vmatpush.bf16.msra.mxu0 0
    %376 = vmatpush.bf16.msra.mxu0 0
    %377 = vmatpush.bf16.msra.mxu0 0
    %378 = vmatpush.bf16.msra.mxu0 %v336
    %379 = vmatpush.bf16.msra.mxu0 %v333
    %380 = vmatmul.bf16.gmra.mxu0 %v344
    %v381 = vpop.f32.mrf.mxu0
    %v382 = vadd.f32 0.0, %v381
    %v383 = vpop.f32.mrf.mxu0
    %384 = vdwg.mxu0
    %v385 = vld [vmem:[%s9] sm:$0x1]
    %v386 = vadd.f32 %v385, %v356
    %388 = vst [vmem:[#allocation1] sm:$0xff] %v369
    %s389 = scalar_lea.vmem [#allocation1], 1
    %v390 = vld [vmem:[%s389] ss:$9 sm:$0xff]
    %v392 = vadd.f32 %v386, %v390
    %394 = vst [vmem:[#allocation1] sm:$0xff] %v382
    %s395 = scalar_lea.vmem [#allocation1], 2
    %v396 = vld [vmem:[%s395] ss:$9 sm:$0xff]
    %v398 = vadd.f32 %v392, %v396
    %399 = vst [vmem:[#allocation14] sm:$0x1] %v398
    // Predicated region
    $region66: #{tpu_custom_call.1} parent=1 // pred_check
      _
    $region67: #{tpu_custom_call.1} parent=1 // pred_check_branch
      %401 = sbr.rel (0) target = $region69
    $region68: #{tpu_custom_call.1} parent=1 // pred_region
      %403 = vsyncadd [#allocation4], 0
      %s405 = sshll.u32 [#allocation13], 4
      %s406 = int_to_ptr.vmem [resolvable:$true] %s405
      %s407 = sshll.u32 %s10, 4
      %s408 = int_to_ptr.hbm [resolvable:$true] %s407
      %410 = dma.vmem_to_hbm [thread:$0]  %s406, 128, %s408, [#allocation4]
    $region69: #{tpu_custom_call.1} parent=1 // pred_fallthru
      _
    // Predicated region
    $region70: #{tpu_custom_call.1} parent=1 // pred_check
      _
    $region71: #{tpu_custom_call.1} parent=1 // pred_check_branch
      %412 = sbr.rel (0) target = $region73
    $region72: #{tpu_custom_call.1} parent=1 // pred_region
      %414 = vsyncadd [#allocation15], 0
      %s416 = sshll.u32 [#allocation14], 4
      %s417 = int_to_ptr.vmem [resolvable:$true] %s416
      %s418 = sshll.u32 %s11, 4
      %s419 = int_to_ptr.hbm [resolvable:$true] %s418
      %421 = dma.vmem_to_hbm [thread:$0]  %s417, 16, %s419, [#allocation15]
    $region73: #{tpu_custom_call.1} parent=1 // pred_fallthru
      _
    // Predicated region
    $region74: #{tpu_custom_call.1} parent=1 // pred_check
      _
    $region75: #{tpu_custom_call.1} parent=1 // pred_check_branch
      %423 = sbr.rel (0) target = $region77
    $region76: #{tpu_custom_call.1} parent=1 // pred_region
      %425 = dma.done [#allocation4], 128
    $region77: #{tpu_custom_call.1} parent=1 // pred_fallthru
      _
    // Predicated region
    $region78: #{tpu_custom_call.1} parent=1 // pred_check
      _
    $region79: #{tpu_custom_call.1} parent=1 // pred_check_branch
      %427 = sbr.rel (0) target = $region81
    $region80: #{tpu_custom_call.1} parent=1 // pred_region
      %429 = dma.done [#allocation15], 16
    $region81: #{tpu_custom_call.1} parent=1 // pred_fallthru
      _
    %430 = vsyncpa [#allocation3], 1
    %431 = vsyncpa [#allocation6], 1
    %432 = vsyncpa [#allocation9], 1
    %433 = vsyncpa [#allocation12], 1
    %434 = vsyncpa [#allocation4], 1
    %435 = vsyncpa [#allocation15], 1

</llo_original>
